<compile_context>
chip_gen: v5e
topology: v5e:2x2
jax: 0.10.0
libtpu: 0.0.40
codegen_flags: <defaults>
</compile_context>

<pallas_src>
import functools

import numpy as np
import jax
import jax.numpy as jnp
from jax.experimental import pallas as pl
from jax.experimental.pallas import tpu as pltpu


def _round_up(x, m):
    return ((x + m - 1) // m) * m


# --------------------------------------------------------------------------------------
# Kernel 1: streaming group-wise pooling (segment row sums of im and s).
# --------------------------------------------------------------------------------------
def _gwc_pool_kernel(clip_lo_ref, clip_hi_ref, cap_lo_ref, cap_hi_ref,   # (n_pad,1) i32
                     im_ref, s_ref,                                      # (tile, D) blocks
                     im_out_ref, s_out_ref,                              # (n_pad, D) f32 accum
                     *, n_pad, tile, tiles_per_core, im_tiles, s_tiles):
    c = pl.program_id(0)
    t = pl.program_id(1)

    @pl.when(t == 0)
    def _init():
        im_out_ref[...] = jnp.zeros_like(im_out_ref)
        s_out_ref[...] = jnp.zeros_like(s_out_ref)

    g = c * tiles_per_core + t          # global row-tile index for this core/step
    base = g * tile                     # global row offset of this tile

    # Shared column-id iota, built once per step, reused for both masks.
    col_ids = base + jax.lax.broadcasted_iota(jnp.int32, (n_pad, tile), 1)

    @pl.when(g < im_tiles)
    def _acc_im():
        # Two broadcast compares + AND (no per-group select chain).
        m = ((col_ids >= clip_lo_ref[...]) & (col_ids < clip_hi_ref[...])).astype(im_ref.dtype)
        im_out_ref[...] += jnp.dot(m, im_ref[...], preferred_element_type=jnp.float32)

    @pl.when(g < s_tiles)
    def _acc_s():
        m = ((col_ids >= cap_lo_ref[...]) & (col_ids < cap_hi_ref[...])).astype(s_ref.dtype)
        s_out_ref[...] += jnp.dot(m, s_ref[...], preferred_element_type=jnp.float32)


# --------------------------------------------------------------------------------------
# Kernel 2: tiny N x N epilogue (means, diag, hinge costs, sum) — single invocation.
# --------------------------------------------------------------------------------------
def _gwc_epilogue_kernel(im_parts_ref, s_parts_ref,        # (C, n_pad, D) f32 partials
                         clip_inv_ref, cap_inv_ref,        # (n_pad, 1) f32 (0 for pad rows)
                         out_ref,                          # (1, 1) SMEM scalar
                         *, margin, norm, n_groups, n_pad, n_cores):
    im_sum = im_parts_ref[0]
    s_sum = s_parts_ref[0]
    for c in range(1, n_cores):                           # static, tiny
        im_sum = im_sum + im_parts_ref[c]
        s_sum = s_sum + s_parts_ref[c]

    im_mean = im_sum * clip_inv_ref[...]                  # (n_pad, D)
    s_mean = s_sum * cap_inv_ref[...]                     # (n_pad, D)

    # scores_reduced = mean_i(im) @ mean_j(s).T — contract on D, no explicit transpose.
    red = jax.lax.dot_general(im_mean, s_mean, (((1,), (1,)), ((), ())),
                              preferred_element_type=jnp.float32)   # (n_pad, n_pad)

    rows = jax.lax.broadcasted_iota(jnp.int32, (n_pad, n_pad), 0)
    cols = jax.lax.broadcasted_iota(jnp.int32, (n_pad, n_pad), 1)
    eye = rows == cols
    valid = (rows < n_groups) & (cols < n_groups)

    diag_sel = jnp.where(eye & valid, red, 0.0)
    diag_col = jnp.sum(diag_sel, axis=1, keepdims=True)   # (n_pad, 1)
    diag_row = jnp.sum(diag_sel, axis=0, keepdims=True)   # (1, n_pad)

    cost_s = jnp.maximum(margin + red - diag_col, 0.0)
    cost_im = jnp.maximum(margin + red - diag_row, 0.0)

    keep = valid & jnp.logical_not(eye)
    total = jnp.sum(jnp.where(keep, cost_s + cost_im, 0.0))
    if norm:
        total = total / float(n_groups * n_groups)
    out_ref[0, 0] = total.astype(jnp.float32)


# --------------------------------------------------------------------------------------
# Wrapper
# --------------------------------------------------------------------------------------
def _choose_tile(row_tile, rows_max, D, dsize, sublane):
    try:
        vmem_cap = int(pltpu.get_tpu_info().vmem_capacity_bytes)
    except Exception:
        vmem_cap = 64 << 20                        # v7x worst case (64 MiB / TC)
    # Double-buffered (tile, D) blocks for both streams must stay well inside scoped VMEM.
    budget = min(vmem_cap // 4, 24 << 20)
    cap = budget // (2 * 2 * D * dsize)
    if row_tile is not None:
        cap = min(cap, int(row_tile))
    cap = min(cap, 2048, _round_up(rows_max, sublane))
    cap = max(sublane, (cap // sublane) * sublane)
    return int(cap)


def groupwise_contrastive_loss(im, s, num_clips, num_caps,
                               margin=0.0, max_violation=False, norm=True,
                               row_tile=None):
    """Pallas implementation of GroupWiseContrastiveLoss.forward (mean path)."""
    # TODO(synk): max_violation=True (block-wise max) path not implemented.
    assert not max_violation, "only the default max_violation=False (mean) path is implemented"

    num_clips = [int(x) for x in num_clips]
    num_caps = [int(x) for x in num_caps]
    N = len(num_clips)
    assert N == len(num_caps)
    assert all(c > 0 for c in num_clips) and all(c > 0 for c in num_caps), "empty group"

    TC, D = im.shape
    TS, Ds = s.shape
    assert D == Ds
    assert sum(num_clips) == TC and sum(num_caps) == TS

    dsize = max(jnp.dtype(im.dtype).itemsize, jnp.dtype(s.dtype).itemsize)
    sublane = {4: 8, 2: 16, 1: 32}.get(int(dsize), 8)   # dtype-aware sublane multiple

    n_pad = max(sublane, _round_up(N, sublane))         # padded pooled-group rows

    tile = _choose_tile(row_tile, max(TC, TS), D, dsize, sublane)

    C = 2                                               # core-parallel slices (v7x megacore)
    im_tiles = -(-TC // tile)
    s_tiles = -(-TS // tile)
    tiles_per_core = -(-max(im_tiles, s_tiles) // C)

    def pad_rows(x, n_tiles):                           # minimal per-array pad (tail only)
        target = n_tiles * tile
        if x.shape[0] == target:
            return x
        return jnp.pad(x, ((0, target - x.shape[0]), (0, 0)))

    im_p = pad_rows(im, im_tiles)                       # native dtype kept
    s_p = pad_rows(s, s_tiles)

    # Per-group [lower, upper) row bounds and inverse counts — host-side constants.
    clip_off = np.cumsum([0] + num_clips)
    cap_off = np.cumsum([0] + num_caps)

    def bounds(off):
        lo = np.zeros((n_pad, 1), np.int32)
        hi = np.zeros((n_pad, 1), np.int32)             # pad rows: lo == hi -> empty mask
        lo[:N, 0] = off[:-1]
        hi[:N, 0] = off[1:]
        return jnp.asarray(lo), jnp.asarray(hi)

    clip_lo, clip_hi = bounds(clip_off)
    cap_lo, cap_hi = bounds(cap_off)

    clip_inv = np.zeros((n_pad, 1), np.float32)
    cap_inv = np.zeros((n_pad, 1), np.float32)
    clip_inv[:N, 0] = 1.0 / np.asarray(num_clips, np.float64)
    cap_inv[:N, 0] = 1.0 / np.asarray(num_caps, np.float64)
    clip_inv = jnp.asarray(clip_inv)
    cap_inv = jnp.asarray(cap_inv)

    # ---- streaming pooling kernel ----
    pool_kernel = functools.partial(
        _gwc_pool_kernel, n_pad=n_pad, tile=tile, tiles_per_core=tiles_per_core,
        im_tiles=im_tiles, s_tiles=s_tiles)

    def _im_map(c, t):
        return (jnp.minimum(c * tiles_per_core + t, im_tiles - 1), 0)

    def _s_map(c, t):
        return (jnp.minimum(c * tiles_per_core + t, s_tiles - 1), 0)

    small_spec = pl.BlockSpec((n_pad, 1), lambda c, t: (0, 0))

    vmem_need = 2 * 2 * tile * D * int(dsize) + 2 * 2 * n_pad * D * 4 + (4 << 20)
    vmem_limit = int(min(max(vmem_need, 16 << 20), 48 << 20))

    bytes_accessed = int(im_p.size * im_p.dtype.itemsize + s_p.size * s_p.dtype.itemsize
                         + 2 * C * n_pad * D * 4)
    flops = int(2 * n_pad * (im_p.shape[0] + s_p.shape[0]) * D)

    im_pool_parts, s_pool_parts = pl.pallas_call(
        pool_kernel,
        out_shape=(jax.ShapeDtypeStruct((C, n_pad, D), jnp.float32),
                   jax.ShapeDtypeStruct((C, n_pad, D), jnp.float32)),
        grid_spec=pltpu.PrefetchScalarGridSpec(
            num_scalar_prefetch=0,
            grid=(C, tiles_per_core),
            in_specs=[
                small_spec, small_spec, small_spec, small_spec,
                pl.BlockSpec((tile, D), _im_map),
                pl.BlockSpec((tile, D), _s_map),
            ],
            out_specs=(
                pl.BlockSpec((None, n_pad, D), lambda c, t: (c, 0, 0)),
                pl.BlockSpec((None, n_pad, D), lambda c, t: (c, 0, 0)),
            ),
        ),
        compiler_params=pltpu.CompilerParams(
            dimension_semantics=("parallel", "arbitrary"),
            vmem_limit_bytes=vmem_limit),
        cost_estimate=pl.CostEstimate(flops=flops, transcendentals=0,
                                      bytes_accessed=bytes_accessed),
    )(clip_lo, clip_hi, cap_lo, cap_hi, im_p, s_p)

    # ---- tiny epilogue kernel (single invocation) ----
    epilogue = functools.partial(
        _gwc_epilogue_kernel, margin=float(margin), norm=bool(norm),
        n_groups=N, n_pad=n_pad, n_cores=C)

    out = pl.pallas_call(
        epilogue,
        out_shape=jax.ShapeDtypeStruct((1, 1), jnp.float32),
        grid_spec=pltpu.PrefetchScalarGridSpec(
            num_scalar_prefetch=0,
            grid=(1,),
            in_specs=[
                pl.BlockSpec((C, n_pad, D), lambda i: (0, 0, 0)),
                pl.BlockSpec((C, n_pad, D), lambda i: (0, 0, 0)),
                pl.BlockSpec((n_pad, 1), lambda i: (0, 0)),
                pl.BlockSpec((n_pad, 1), lambda i: (0, 0)),
            ],
            out_specs=pl.BlockSpec(memory_space=pltpu.MemorySpace.SMEM),
        ),
        compiler_params=pltpu.CompilerParams(dimension_semantics=("arbitrary",)),
    )(im_pool_parts, s_pool_parts, clip_inv, cap_inv)
    return out[0, 0]


# --------------------------------------------------------------------------------------
# Pure-numpy reference reproducing the PyTorch module (mean path).
# --------------------------------------------------------------------------------------
def _reference_loss(im, s, num_clips, num_caps, margin=0.0, norm=True):
    im = np.asarray(im, dtype=np.float64)
    s = np.asarray(s, dtype=np.float64)
    scores = im @ s.T
    N = len(num_clips)
    red = np.zeros((N, N), dtype=np.float64)
    for i in range(N):
        cs, ce = sum(num_clips[:i]), sum(num_clips[:i + 1])
        for j in range(N):
            ps, pe = sum(num_caps[:j]), sum(num_caps[:j + 1])
            red[i, j] = scores[cs:ce, ps:pe].mean()
    diag = np.diag(red).reshape(N, 1)
    cost_s = np.maximum(margin + red - diag, 0.0)
    cost_im = np.maximum(margin + red - diag.T, 0.0)
    np.fill_diagonal(cost_s, 0.0)
    np.fill_diagonal(cost_im, 0.0)
    total = cost_s.sum() + cost_im.sum()
    return total / (N * N) if norm else total


if __name__ == "__main__":
    key = jax.random.PRNGKey(0)
    k_im, k_s, k_im2, k_s2 = jax.random.split(key, 4)
    D = 32

    # Case 1: 4 video groups / 4 caption groups, equal totals, margin = 0.
    num_clips = [3, 5, 4, 4]   # total_clips = 16
    num_caps = [4, 3, 5, 4]    # total_caps  = 16
    im = jax.random.normal(k_im, (sum(num_clips), D), dtype=jnp.float32)
    s = jax.random.normal(k_s, (sum(num_caps), D), dtype=jnp.float32)
    loss = groupwise_contrastive_loss(im, s, num_clips, num_caps,
                                      margin=0.0, max_violation=False, norm=True)
    loss = jax.block_until_ready(loss)
    ref = _reference_loss(np.asarray(im), np.asarray(s), num_clips, num_caps,
                          margin=0.0, norm=True)
    assert np.allclose(np.asarray(loss), ref, atol=1e-4), (loss, ref)

    # Case 2: unequal totals (exercises independent extents / tail masking), margin > 0.
    num_clips2 = [3, 5, 4, 4]      # total = 16
    num_caps2 = [4, 3, 6, 4]       # total = 17
    im2 = jax.random.normal(k_im2, (sum(num_clips2), D), dtype=jnp.float32)
    s2 = jax.random.normal(k_s2, (sum(num_caps2), D), dtype=jnp.float32)
    loss2 = groupwise_contrastive_loss(im2, s2, num_clips2, num_caps2,
                                       margin=0.2, max_violation=False, norm=True)
    loss2 = jax.block_until_ready(loss2)
    ref2 = _reference_loss(np.asarray(im2), np.asarray(s2), num_clips2, num_caps2,
                           margin=0.2, norm=True)
    assert np.allclose(np.asarray(loss2), ref2, atol=1e-4), (loss2, ref2)

    print("KERNEL_OK")
</pallas_src>

<mosaic_0001>
module attributes {stable_mosaic.version = 11 : i64} {
  func.func @_gwc_pool_kernel(%arg0: i32, %arg1: i32, %arg2: memref<8x1xi32, #tpu.memory_space<vmem>>, %arg3: memref<8x1xi32, #tpu.memory_space<vmem>>, %arg4: memref<8x1xi32, #tpu.memory_space<vmem>>, %arg5: memref<8x1xi32, #tpu.memory_space<vmem>>, %arg6: memref<16x32xf32, #tpu.memory_space<vmem>>, %arg7: memref<16x32xf32, #tpu.memory_space<vmem>>, %arg8: memref<1x8x32xf32, #tpu.memory_space<vmem>>, %arg9: memref<1x8x32xf32, #tpu.memory_space<vmem>>) attributes {dimension_semantics = [#tpu.dimension_semantics<parallel>, #tpu.dimension_semantics<arbitrary>], iteration_bounds = array<i64: 2, 1>, scalar_prefetch = 0 : i64, scratch_operands = 0 : i64, tpu.core_type = #tpu.core_type<tc>, window_params = [{pipeline_mode = #tpu.pipeline_mode<synchronous>, transform_indices = @transform_0, window_bounds = array<i64: 8, 1>}, {pipeline_mode = #tpu.pipeline_mode<synchronous>, transform_indices = @transform_1, window_bounds = array<i64: 8, 1>}, {pipeline_mode = #tpu.pipeline_mode<synchronous>, transform_indices = @transform_2, window_bounds = array<i64: 8, 1>}, {pipeline_mode = #tpu.pipeline_mode<synchronous>, transform_indices = @transform_3, window_bounds = array<i64: 8, 1>}, {transform_indices = @transform_4, window_bounds = array<i64: 16, 32>}, {transform_indices = @transform_5, window_bounds = array<i64: 16, 32>}, {transform_indices = @transform_6, window_bounds = array<i64: 1, 8, 32>}, {transform_indices = @transform_7, window_bounds = array<i64: 1, 8, 32>}]} {
    %c0_i32 = arith.constant 0 : i32
    %0 = arith.cmpi eq, %arg1, %c0_i32 : i32
    %1 = arith.extui %0 : i1 to i32
    %c0_i32_0 = arith.constant 0 : i32
    %2 = arith.cmpi ne, %1, %c0_i32_0 : i32
    scf.if %2 {
      %cst = arith.constant 0.000000e+00 : f32
      %15 = vector.broadcast %cst : f32 to vector<8x32xf32>
      %c0 = arith.constant 0 : index
      %c0_5 = arith.constant 0 : index
      %c0_6 = arith.constant 0 : index
      %16 = vector.load %arg8[%c0, %c0_5, %c0_6] : memref<1x8x32xf32, #tpu.memory_space<vmem>>, vector<1x8x32xf32>
      %17 = vector.shape_cast %16 : vector<1x8x32xf32> to vector<8x32xf32>
      %18 = vector.shape_cast %15 : vector<8x32xf32> to vector<1x8x32xf32>
      tpu.vector_store %arg8[%c0, %c0_5, %c0_6], %18 {strides = array<i32>} : memref<1x8x32xf32, #tpu.memory_space<vmem>>, vector<1x8x32xf32>,
      %cst_7 = arith.constant 0.000000e+00 : f32
      %19 = vector.broadcast %cst_7 : f32 to vector<8x32xf32>
      %c0_8 = arith.constant 0 : index
      %c0_9 = arith.constant 0 : index
      %c0_10 = arith.constant 0 : index
      %20 = vector.load %arg9[%c0_8, %c0_9, %c0_10] : memref<1x8x32xf32, #tpu.memory_space<vmem>>, vector<1x8x32xf32>
      %21 = vector.shape_cast %20 : vector<1x8x32xf32> to vector<8x32xf32>
      %22 = vector.shape_cast %19 : vector<8x32xf32> to vector<1x8x32xf32>
      tpu.vector_store %arg9[%c0_8, %c0_9, %c0_10], %22 {strides = array<i32>} : memref<1x8x32xf32, #tpu.memory_space<vmem>>, vector<1x8x32xf32>,
    } else {
    }
    %c1_i32 = arith.constant 1 : i32
    %3 = arith.muli %arg0, %c1_i32 : i32
    %4 = arith.addi %3, %arg1 : i32
    %c16_i32 = arith.constant 16 : i32
    %5 = arith.muli %4, %c16_i32 : i32
    %6 = tpu.iota {dimensions = array<i32: 1>} : vector<8x16xi32>
    %7 = vector.broadcast %5 : i32 to vector<8x16xi32>
    %8 = arith.addi %7, %6 : vector<8x16xi32>
    %c1_i32_1 = arith.constant 1 : i32
    %9 = arith.cmpi slt, %4, %c1_i32_1 : i32
    %10 = arith.extui %9 : i1 to i32
    %c0_i32_2 = arith.constant 0 : i32
    %11 = arith.cmpi ne, %10, %c0_i32_2 : i32
    scf.if %11 {
      %c0 = arith.constant 0 : index
      %c0_5 = arith.constant 0 : index
      %15 = vector.load %arg2[%c0, %c0_5] : memref<8x1xi32, #tpu.memory_space<vmem>>, vector<8x1xi32>
      %16 = vector.broadcast %15 : vector<8x1xi32> to vector<8x16xi32>
      %17 = arith.cmpi sge, %8, %16 : vector<8x16xi32>
      %c0_6 = arith.constant 0 : index
      %c0_7 = arith.constant 0 : index
      %18 = vector.load %arg3[%c0_6, %c0_7] : memref<8x1xi32, #tpu.memory_space<vmem>>, vector<8x1xi32>
      %19 = vector.broadcast %18 : vector<8x1xi32> to vector<8x16xi32>
      %20 = arith.cmpi slt, %8, %19 : vector<8x16xi32>
      %21 = arith.andi %17, %20 : vector<8x16xi1>
      %22 = arith.extui %21 : vector<8x16xi1> to vector<8x16xi32>
      %23 = arith.sitofp %22 : vector<8x16xi32> to vector<8x16xf32>
      %c0_8 = arith.constant 0 : index
      %c0_9 = arith.constant 0 : index
      %c0_10 = arith.constant 0 : index
      %24 = vector.load %arg8[%c0_8, %c0_9, %c0_10] : memref<1x8x32xf32, #tpu.memory_space<vmem>>, vector<1x8x32xf32>
      %25 = vector.shape_cast %24 : vector<1x8x32xf32> to vector<8x32xf32>
      %c0_11 = arith.constant 0 : index
      %c0_12 = arith.constant 0 : index
      %26 = vector.load %arg6[%c0_11, %c0_12] : memref<16x32xf32, #tpu.memory_space<vmem>>, vector<16x32xf32>
      %cst = arith.constant dense<0.000000e+00> : vector<8x32xf32>
      %27 = tpu.matmul %23, %26, %cst {dimension_numbers = #tpu.dot_dimension_numbers<[1], [0], [0], [1], [0, 0, 1, 1], [], []>} : vector<8x16xf32>, vector<16x32xf32>, vector<8x32xf32> -> vector<8x32xf32>
      %28 = arith.addf %25, %27 : vector<8x32xf32>
      %c0_13 = arith.constant 0 : index
      %c0_14 = arith.constant 0 : index
      %c0_15 = arith.constant 0 : index
      %29 = vector.load %arg8[%c0_13, %c0_14, %c0_15] : memref<1x8x32xf32, #tpu.memory_space<vmem>>, vector<1x8x32xf32>
      %30 = vector.shape_cast %29 : vector<1x8x32xf32> to vector<8x32xf32>
      %31 = vector.shape_cast %28 : vector<8x32xf32> to vector<1x8x32xf32>
      tpu.vector_store %arg8[%c0_13, %c0_14, %c0_15], %31 {strides = array<i32>} : memref<1x8x32xf32, #tpu.memory_space<vmem>>, vector<1x8x32xf32>,
    } else {
    }
    %c1_i32_3 = arith.constant 1 : i32
    %12 = arith.cmpi slt, %4, %c1_i32_3 : i32
    %13 = arith.extui %12 : i1 to i32
    %c0_i32_4 = arith.constant 0 : i32
    %14 = arith.cmpi ne, %13, %c0_i32_4 : i32
    scf.if %14 {
      %c0 = arith.constant 0 : index
      %c0_5 = arith.constant 0 : index
      %15 = vector.load %arg4[%c0, %c0_5] : memref<8x1xi32, #tpu.memory_space<vmem>>, vector<8x1xi32>
      %16 = vector.broadcast %15 : vector<8x1xi32> to vector<8x16xi32>
      %17 = arith.cmpi sge, %8, %16 : vector<8x16xi32>
      %c0_6 = arith.constant 0 : index
      %c0_7 = arith.constant 0 : index
      %18 = vector.load %arg5[%c0_6, %c0_7] : memref<8x1xi32, #tpu.memory_space<vmem>>, vector<8x1xi32>
      %19 = vector.broadcast %18 : vector<8x1xi32> to vector<8x16xi32>
      %20 = arith.cmpi slt, %8, %19 : vector<8x16xi32>
      %21 = arith.andi %17, %20 : vector<8x16xi1>
      %22 = arith.extui %21 : vector<8x16xi1> to vector<8x16xi32>
      %23 = arith.sitofp %22 : vector<8x16xi32> to vector<8x16xf32>
      %c0_8 = arith.constant 0 : index
      %c0_9 = arith.constant 0 : index
      %c0_10 = arith.constant 0 : index
      %24 = vector.load %arg9[%c0_8, %c0_9, %c0_10] : memref<1x8x32xf32, #tpu.memory_space<vmem>>, vector<1x8x32xf32>
      %25 = vector.shape_cast %24 : vector<1x8x32xf32> to vector<8x32xf32>
      %c0_11 = arith.constant 0 : index
      %c0_12 = arith.constant 0 : index
      %26 = vector.load %arg7[%c0_11, %c0_12] : memref<16x32xf32, #tpu.memory_space<vmem>>, vector<16x32xf32>
      %cst = arith.constant dense<0.000000e+00> : vector<8x32xf32>
      %27 = tpu.matmul %23, %26, %cst {dimension_numbers = #tpu.dot_dimension_numbers<[1], [0], [0], [1], [0, 0, 1, 1], [], []>} : vector<8x16xf32>, vector<16x32xf32>, vector<8x32xf32> -> vector<8x32xf32>
      %28 = arith.addf %25, %27 : vector<8x32xf32>
      %c0_13 = arith.constant 0 : index
      %c0_14 = arith.constant 0 : index
      %c0_15 = arith.constant 0 : index
      %29 = vector.load %arg9[%c0_13, %c0_14, %c0_15] : memref<1x8x32xf32, #tpu.memory_space<vmem>>, vector<1x8x32xf32>
      %30 = vector.shape_cast %29 : vector<1x8x32xf32> to vector<8x32xf32>
      %31 = vector.shape_cast %28 : vector<8x32xf32> to vector<1x8x32xf32>
      tpu.vector_store %arg9[%c0_13, %c0_14, %c0_15], %31 {strides = array<i32>} : memref<1x8x32xf32, #tpu.memory_space<vmem>>, vector<1x8x32xf32>,
    } else {
    }
    return
  }
  func.func @transform_0(%arg0: i32, %arg1: i32) -> (i32, i32) {
    %c0_i32 = arith.constant 0 : i32
    %c0_i32_0 = arith.constant 0 : i32
    %c0_i32_1 = arith.constant 0 : i32
    return %c0_i32, %c0_i32_0 : i32, i32
  }
  func.func @transform_1(%arg0: i32, %arg1: i32) -> (i32, i32) {
    %c0_i32 = arith.constant 0 : i32
    %c0_i32_0 = arith.constant 0 : i32
    %c0_i32_1 = arith.constant 0 : i32
    return %c0_i32, %c0_i32_0 : i32, i32
  }
  func.func @transform_2(%arg0: i32, %arg1: i32) -> (i32, i32) {
    %c0_i32 = arith.constant 0 : i32
    %c0_i32_0 = arith.constant 0 : i32
    %c0_i32_1 = arith.constant 0 : i32
    return %c0_i32, %c0_i32_0 : i32, i32
  }
  func.func @transform_3(%arg0: i32, %arg1: i32) -> (i32, i32) {
    %c0_i32 = arith.constant 0 : i32
    %c0_i32_0 = arith.constant 0 : i32
    %c0_i32_1 = arith.constant 0 : i32
    return %c0_i32, %c0_i32_0 : i32, i32
  }
  func.func @transform_4(%arg0: i32, %arg1: i32) -> (i32, i32) {
    %c1_i32 = arith.constant 1 : i32
    %0 = arith.muli %arg0, %c1_i32 : i32
    %1 = arith.addi %0, %arg1 : i32
    %c0_i32 = arith.constant 0 : i32
    %2 = arith.minsi %1, %c0_i32 : i32
    %c0_i32_0 = arith.constant 0 : i32
    %c0_i32_1 = arith.constant 0 : i32
    return %2, %c0_i32_0 : i32, i32
  }
  func.func @transform_5(%arg0: i32, %arg1: i32) -> (i32, i32) {
    %c1_i32 = arith.constant 1 : i32
    %0 = arith.muli %arg0, %c1_i32 : i32
    %1 = arith.addi %0, %arg1 : i32
    %c0_i32 = arith.constant 0 : i32
    %2 = arith.minsi %1, %c0_i32 : i32
    %c0_i32_0 = arith.constant 0 : i32
    %c0_i32_1 = arith.constant 0 : i32
    return %2, %c0_i32_0 : i32, i32
  }
  func.func @transform_6(%arg0: i32, %arg1: i32) -> (i32, i32, i32) {
    %c0_i32 = arith.constant 0 : i32
    %c0_i32_0 = arith.constant 0 : i32
    %c0_i32_1 = arith.constant 0 : i32
    return %arg0, %c0_i32, %c0_i32_0 : i32, i32, i32
  }
  func.func @transform_7(%arg0: i32, %arg1: i32) -> (i32, i32, i32) {
    %c0_i32 = arith.constant 0 : i32
    %c0_i32_0 = arith.constant 0 : i32
    %c0_i32_1 = arith.constant 0 : i32
    return %arg0, %c0_i32, %c0_i32_0 : i32, i32, i32
  }
}

</mosaic_0001>

<llo_original>
// kernel: tpu_custom_call.1
$region0: #{tpu_custom_call.1}
  #allocation0 [shape = 'u32[]', space=smem, size = 0x4, offset = 0x4, fixed_abs, tag = 'smem constant byte address 0x4 - core index']
  #allocation1 [shape = 'u32[72,128]{1,0:T(1,128)}', space=vmem, size = 0x9000, scoped, tag = 'internal scratch']
  %s0 = inlined_call_operand.vmem [shape: s32[8,1], index: 0, kind: input, shape index: {}]
  %s1 = inlined_call_operand.vmem [shape: s32[8,1], index: 1, kind: input, shape index: {}]
  %s2 = inlined_call_operand.vmem [shape: s32[8,1], index: 2, kind: input, shape index: {}]
  %s3 = inlined_call_operand.vmem [shape: s32[8,1], index: 3, kind: input, shape index: {}]
  %s4 = inlined_call_operand.vmem [shape: f32[16,32], index: 4, kind: input, shape index: {}]
  %s5 = inlined_call_operand.vmem [shape: f32[16,32], index: 5, kind: input, shape index: {}]
  %s6 = inlined_call_operand.hbm [shape: f32[2,8,32], index: 6, kind: output, shape index: {0}]
  %s7 = inlined_call_operand.hbm [shape: f32[2,8,32], index: 7, kind: output, shape index: {1}]
  %8 = xla_tuple %s6, %s7
  %s9 = sld [smem:[#allocation0]]
  $region73: #{tpu_custom_call.1} parent=0
    _
  %s11 = ssub.s32 1, %s9
  %s12 = scalar_select 0, %s11, %s9
  $region1: #{tpu_custom_call.1} parent=0
    #allocation2 [shape = 'u8[8192]{0}', space=vmem, size = 0x2000, scoped, tag = 'output window, operand 0']
    #allocation3 [shape = 's32[2]{0}', space=sflag, size = 0x8, scoped, tag = 'scoped memory for tpu_custom_call.1']
    #allocation4 [shape = 'u8[8192]{0}', space=vmem, size = 0x2000, scoped, tag = 'output window, operand 1']
    #allocation5 [shape = 's32[2]{0}', space=sflag, size = 0x8, scoped, tag = 'scoped memory for tpu_custom_call.1']
    %13 = vsyncpa [#allocation3], 0
    %s14 = scalar_lea.sflag [#allocation3], 1
    %15 = vsyncpa %s14, 0
    %16 = vsyncpa [#allocation5], 0
    %s17 = scalar_lea.sflag [#allocation5], 1
    %18 = vsyncpa %s17, 0
    loop: start=0, step=1, limit=4
    $region2: #{tpu_custom_call.1} parent=1 // loop_pre_header
      _
    $region3: #{tpu_custom_call.1} parent=1 // loop_header
      %s20 = sphi 0, %s24
      %p21 = scmp.ge.s32.totalorder %s20, 4
      %s27 = sphi 0, %s39
      %s28 = sphi 0, %s35
      %s29 = sphi 0, %s27
      %s30 = sphi 0, %s28
      %s31 = sphi 0, %s29
      %s32 = sphi 0, %s30
      %s40 = sphi 0, %s40
      %s42 = sphi 0, %s40
      %s43 = sphi 0, %s42
      %s57 = sphi 0, %s43
      %s61 = sphi 0, %s61
      %s63 = sphi 0, %s61
      %s64 = sphi 0, %s63
      %s78 = sphi 0, %s64
      %s82 = sphi 0, %s82
      %s84 = sphi 0, %s82
      %s85 = sphi 0, %s84
      %s99 = sphi 0, %s85
      %s103 = sphi 0, %s103
      %s105 = sphi 0, %s103
      %s106 = sphi 0, %s105
      %s120 = sphi 0, %s106
      %s132 = sphi 0, %s134
      %s135 = sphi 0, %s132
      %s136 = sphi 0, %s135
      %s152 = sphi 0, %s136
      %s164 = sphi 0, %s166
      %s167 = sphi 0, %s164
      %s168 = sphi 0, %s167
      %s184 = sphi 0, %s168
      %s190 = sphi 0, %s192
      %s193 = sphi 0, %s190
      %s194 = sphi 0, %s193
      %s210 = sphi 0, %s194
      %s216 = sphi 0, %s218
      %s219 = sphi 0, %s216
      %s220 = sphi 0, %s219
      %s236 = sphi 0, %s220
    $region4: #{tpu_custom_call.1} parent=1 // loop_header_branch
      %23 = sbr.rel (%p21) target = $region8
    $region5: #{tpu_custom_call.1} parent=1 // loop_body
      %s25 = ssub.s32 %s20, 1
      %s26 = ssub.s32 %s20, 2
      %s33 = sadd.s32 1, %s28
      %p34 = scmp.ge.s32.totalorder %s33, 1
      %s35 = scalar_select %p34, 0, %s33
      %s36 = sadd.s32 1, %s27
      %s37 = scalar_select %p34, %s36, %s27
      %p38 = scmp.ge.s32.totalorder %s37, 2
      %s39 = scalar_select %p38, 0, %s37
      %s41 = sadd.s32 %s40, 1
      %p44 = scmp.eq.s32.totalorder %s20, 1
      %p45 = scmp.ne.s32.totalorder %s40, %s42
      %p46 = scmp.eq.s32.totalorder %s20, 0
      %p47 = por %p45, %p46
      %p48 = scmp.ne.s32.totalorder %s40, %s42
      %p49 = scmp.eq.s32.totalorder %s25, 1
      %p50 = por %p48, %p49
      %p51 = scmp.ne.s32.totalorder %s42, %s43
      %p52 = scmp.eq.s32.totalorder %s25, 0
      %p53 = por %p51, %p52
      %p54 = scmp.ne.s32.totalorder %s42, %s43
      %p55 = scmp.eq.s32.totalorder %s26, 1
      %p56 = por %p54, %p55
      %p58 = scmp.ne.s32.totalorder %s43, %s57
      %p59 = scmp.eq.s32.totalorder %s26, 0
      %p60 = por %p58, %p59
      %s62 = sadd.s32 %s61, 1
      %p65 = scmp.eq.s32.totalorder %s20, 1
      %p66 = scmp.ne.s32.totalorder %s61, %s63
      %p67 = scmp.eq.s32.totalorder %s20, 0
      %p68 = por %p66, %p67
      %p69 = scmp.ne.s32.totalorder %s61, %s63
      %p70 = scmp.eq.s32.totalorder %s25, 1
      %p71 = por %p69, %p70
      %p72 = scmp.ne.s32.totalorder %s63, %s64
      %p73 = scmp.eq.s32.totalorder %s25, 0
      %p74 = por %p72, %p73
      %p75 = scmp.ne.s32.totalorder %s63, %s64
      %p76 = scmp.eq.s32.totalorder %s26, 1
      %p77 = por %p75, %p76
      %p79 = scmp.ne.s32.totalorder %s64, %s78
      %p80 = scmp.eq.s32.totalorder %s26, 0
      %p81 = por %p79, %p80
      %s83 = sadd.s32 %s82, 1
      %p86 = scmp.eq.s32.totalorder %s20, 1
      %p87 = scmp.ne.s32.totalorder %s82, %s84
      %p88 = scmp.eq.s32.totalorder %s20, 0
      %p89 = por %p87, %p88
      %p90 = scmp.ne.s32.totalorder %s82, %s84
      %p91 = scmp.eq.s32.totalorder %s25, 1
      %p92 = por %p90, %p91
      %p93 = scmp.ne.s32.totalorder %s84, %s85
      %p94 = scmp.eq.s32.totalorder %s25, 0
      %p95 = por %p93, %p94
      %p96 = scmp.ne.s32.totalorder %s84, %s85
      %p97 = scmp.eq.s32.totalorder %s26, 1
      %p98 = por %p96, %p97
      %p100 = scmp.ne.s32.totalorder %s85, %s99
      %p101 = scmp.eq.s32.totalorder %s26, 0
      %p102 = por %p100, %p101
      %s104 = sadd.s32 %s103, 1
      %p107 = scmp.eq.s32.totalorder %s20, 1
      %p108 = scmp.ne.s32.totalorder %s103, %s105
      %p109 = scmp.eq.s32.totalorder %s20, 0
      %p110 = por %p108, %p109
      %p111 = scmp.ne.s32.totalorder %s103, %s105
      %p112 = scmp.eq.s32.totalorder %s25, 1
      %p113 = por %p111, %p112
      %p114 = scmp.ne.s32.totalorder %s105, %s106
      %p115 = scmp.eq.s32.totalorder %s25, 0
      %p116 = por %p114, %p115
      %p117 = scmp.ne.s32.totalorder %s105, %s106
      %p118 = scmp.eq.s32.totalorder %s26, 1
      %p119 = por %p117, %p118
      %p121 = scmp.ne.s32.totalorder %s106, %s120
      %p122 = scmp.eq.s32.totalorder %s26, 0
      %p123 = por %p121, %p122
      %s124 = sadd.s32 %s27, %s28
      %p125 = scmp.lt.s32.totalorder %s124, 0
      %s126 = scalar_select %p125, %s124, 0
      %s127 = sadd.s32 %s39, %s35
      %p128 = scmp.lt.s32.totalorder %s127, 0
      %s129 = scalar_select %p128, %s127, 0
      %s130 = ssub.s32 %s126, %s129
      %p131 = scmp.eq.s32.totalorder %s130, 0
      %s133 = sadd.s32 %s132, 1
      %s134 = scalar_select %p131, %s132, %s133
      %p137 = pneg %p131
      %p138 = scmp.eq.s32.totalorder %s20, 1
      %p139 = por %p137, %p138
      %p140 = scmp.ne.s32.totalorder %s132, %s135
      %p141 = scmp.eq.s32.totalorder %s20, 0
      %p142 = por %p140, %p141
      %p143 = scmp.ne.s32.totalorder %s132, %s135
      %p144 = scmp.eq.s32.totalorder %s25, 1
      %p145 = por %p143, %p144
      %p146 = scmp.ne.s32.totalorder %s135, %s136
      %p147 = scmp.eq.s32.totalorder %s25, 0
      %p148 = por %p146, %p147
      %p149 = scmp.ne.s32.totalorder %s135, %s136
      %p150 = scmp.eq.s32.totalorder %s26, 1
      %p151 = por %p149, %p150
      %p153 = scmp.ne.s32.totalorder %s136, %s152
      %p154 = scmp.eq.s32.totalorder %s26, 0
      %p155 = por %p153, %p154
      %s156 = sadd.s32 %s27, %s28
      %p157 = scmp.lt.s32.totalorder %s156, 0
      %s158 = scalar_select %p157, %s156, 0
      %s159 = sadd.s32 %s39, %s35
      %p160 = scmp.lt.s32.totalorder %s159, 0
      %s161 = scalar_select %p160, %s159, 0
      %s162 = ssub.s32 %s158, %s161
      %p163 = scmp.eq.s32.totalorder %s162, 0
      %s165 = sadd.s32 %s164, 1
      %s166 = scalar_select %p163, %s164, %s165
      %p169 = pneg %p163
      %p170 = scmp.eq.s32.totalorder %s20, 1
      %p171 = por %p169, %p170
      %p172 = scmp.ne.s32.totalorder %s164, %s167
      %p173 = scmp.eq.s32.totalorder %s20, 0
      %p174 = por %p172, %p173
      %p175 = scmp.ne.s32.totalorder %s164, %s167
      %p176 = scmp.eq.s32.totalorder %s25, 1
      %p177 = por %p175, %p176
      %p178 = scmp.ne.s32.totalorder %s167, %s168
      %p179 = scmp.eq.s32.totalorder %s25, 0
      %p180 = por %p178, %p179
      %p181 = scmp.ne.s32.totalorder %s167, %s168
      %p182 = scmp.eq.s32.totalorder %s26, 1
      %p183 = por %p181, %p182
      %p185 = scmp.ne.s32.totalorder %s168, %s184
      %p186 = scmp.eq.s32.totalorder %s26, 0
      %p187 = por %p185, %p186
      %s188 = ssub.s32 %s27, %s39
      %p189 = scmp.eq.s32.totalorder %s188, 0
      %s191 = sadd.s32 %s190, 1
      %s192 = scalar_select %p189, %s190, %s191
      %p195 = pneg %p189
      %p196 = scmp.eq.s32.totalorder %s20, 1
      %p197 = por %p195, %p196
      %p198 = scmp.ne.s32.totalorder %s190, %s193
      %p199 = scmp.eq.s32.totalorder %s20, 0
      %p200 = por %p198, %p199
      %p201 = scmp.ne.s32.totalorder %s190, %s193
      %p202 = scmp.eq.s32.totalorder %s25, 1
      %p203 = por %p201, %p202
      %p204 = scmp.ne.s32.totalorder %s193, %s194
      %p205 = scmp.eq.s32.totalorder %s25, 0
      %p206 = por %p204, %p205
      %p207 = scmp.ne.s32.totalorder %s193, %s194
      %p208 = scmp.eq.s32.totalorder %s26, 1
      %p209 = por %p207, %p208
      %p211 = scmp.ne.s32.totalorder %s194, %s210
      %p212 = scmp.eq.s32.totalorder %s26, 0
      %p213 = por %p211, %p212
      %s214 = ssub.s32 %s27, %s39
      %p215 = scmp.eq.s32.totalorder %s214, 0
      %s217 = sadd.s32 %s216, 1
      %s218 = scalar_select %p215, %s216, %s217
      %p221 = pneg %p215
      %p222 = scmp.eq.s32.totalorder %s20, 1
      %p223 = por %p221, %p222
      %p224 = scmp.ne.s32.totalorder %s216, %s219
      %p225 = scmp.eq.s32.totalorder %s20, 0
      %p226 = por %p224, %p225
      %p227 = scmp.ne.s32.totalorder %s216, %s219
      %p228 = scmp.eq.s32.totalorder %s25, 1
      %p229 = por %p227, %p228
      %p230 = scmp.ne.s32.totalorder %s219, %s220
      %p231 = scmp.eq.s32.totalorder %s25, 0
      %p232 = por %p230, %p231
      %p233 = scmp.ne.s32.totalorder %s219, %s220
      %p234 = scmp.eq.s32.totalorder %s26, 1
      %p235 = por %p233, %p234
      %p237 = scmp.ne.s32.totalorder %s220, %s236
      %p238 = scmp.eq.s32.totalorder %s26, 0
      %p239 = por %p237, %p238
      %p240 = scmp.le.s32.totalorder 1, %s20
      %p241 = scmp.lt.s32.totalorder %s20, 3
      %p242 = pnand %p240, %p241
      %p243 = pneg %p242
      // Predicated region
      $region9: #{tpu_custom_call.1} parent=5 // pred_check
        _
      $region10: #{tpu_custom_call.1} parent=5 // pred_check_branch
        %245 = sbr.rel (%p242) target = $region12
      $region11: #{tpu_custom_call.1} parent=5 // pred_region
        %s246 = ssub.s32 %s20, 1
        // Predicated region
        $region13: #{tpu_custom_call.1} parent=11 // pred_check
          %p247 = pneg %p53
        $region14: #{tpu_custom_call.1} parent=11 // pred_check_branch
          %249 = sbr.rel (%p247) target = $region16
        $region15: #{tpu_custom_call.1} parent=11 // pred_region
          _
        $region16: #{tpu_custom_call.1} parent=11 // pred_fallthru
          _
        // Predicated region
        $region17: #{tpu_custom_call.1} parent=11 // pred_check
          %p250 = pneg %p74
        $region18: #{tpu_custom_call.1} parent=11 // pred_check_branch
          %252 = sbr.rel (%p250) target = $region20
        $region19: #{tpu_custom_call.1} parent=11 // pred_region
          _
        $region20: #{tpu_custom_call.1} parent=11 // pred_fallthru
          _
        // Predicated region
        $region21: #{tpu_custom_call.1} parent=11 // pred_check
          %p253 = pneg %p95
        $region22: #{tpu_custom_call.1} parent=11 // pred_check_branch
          %255 = sbr.rel (%p253) target = $region24
        $region23: #{tpu_custom_call.1} parent=11 // pred_region
          _
        $region24: #{tpu_custom_call.1} parent=11 // pred_fallthru
          _
        // Predicated region
        $region25: #{tpu_custom_call.1} parent=11 // pred_check
          %p256 = pneg %p116
        $region26: #{tpu_custom_call.1} parent=11 // pred_check_branch
          %258 = sbr.rel (%p256) target = $region28
        $region27: #{tpu_custom_call.1} parent=11 // pred_region
          _
        $region28: #{tpu_custom_call.1} parent=11 // pred_fallthru
          _
      $region12: #{tpu_custom_call.1} parent=5 // pred_fallthru
        _
      %p259 = scmp.lt.s32.totalorder %s20, 2
      // Predicated region
      $region29: #{tpu_custom_call.1} parent=5 // pred_check
        %p260 = pneg %p259
      $region30: #{tpu_custom_call.1} parent=5 // pred_check_branch
        %262 = sbr.rel (%p260) target = $region32
      $region31: #{tpu_custom_call.1} parent=5 // pred_region
        // Predicated region
        $region33: #{tpu_custom_call.1} parent=31 // pred_check
          %p263 = pneg %p142
        $region34: #{tpu_custom_call.1} parent=31 // pred_check_branch
          %265 = sbr.rel (%p263) target = $region36
        $region35: #{tpu_custom_call.1} parent=31 // pred_region
          %s266 = sadd.s32 %s27, %s28
          %p267 = scmp.lt.s32.totalorder %s266, 0
          %s268 = scalar_select %p267, %s266, 0
          %s269 = smul.u32 2, %s268
          %p270 = scmp.lt.s32.totalorder %s269, 1
          %s271 = scalar_select %p270, %s269, 1
          %s272 = smul.addr %s271, 8
          %s273 = scalar_lea.vmem %s4, %s272
          %s274 = sadd.s32 %s27, %s28
          %p275 = scmp.lt.s32.totalorder %s274, 0
          %s276 = scalar_select %p275, %s274, 0
          %s277 = smul.u32 2, %s276
        $region36: #{tpu_custom_call.1} parent=31 // pred_fallthru
          _
        // Predicated region
        $region37: #{tpu_custom_call.1} parent=31 // pred_check
          %p278 = pneg %p174
        $region38: #{tpu_custom_call.1} parent=31 // pred_check_branch
          %280 = sbr.rel (%p278) target = $region40
        $region39: #{tpu_custom_call.1} parent=31 // pred_region
          %s281 = sadd.s32 %s27, %s28
          %p282 = scmp.lt.s32.totalorder %s281, 0
          %s283 = scalar_select %p282, %s281, 0
          %s284 = smul.u32 2, %s283
          %p285 = scmp.lt.s32.totalorder %s284, 1
          %s286 = scalar_select %p285, %s284, 1
          %s287 = smul.addr %s286, 8
          %s288 = scalar_lea.vmem %s5, %s287
          %s289 = sadd.s32 %s27, %s28
          %p290 = scmp.lt.s32.totalorder %s289, 0
          %s291 = scalar_select %p290, %s289, 0
          %s292 = smul.u32 2, %s291
        $region40: #{tpu_custom_call.1} parent=31 // pred_fallthru
          _
      $region32: #{tpu_custom_call.1} parent=5 // pred_fallthru
        _
      %p293 = scmp.le.s32.totalorder 1, %s20
      %p294 = scmp.lt.s32.totalorder %s20, 3
      %p295 = pnand %p293, %p294
      %p296 = pneg %p295
      // Predicated region
      $region41: #{tpu_custom_call.1} parent=5 // pred_check
        _
      $region42: #{tpu_custom_call.1} parent=5 // pred_check_branch
        %298 = sbr.rel (%p295) target = $region44
      $region43: #{tpu_custom_call.1} parent=5 // pred_region
        %s299 = ssub.s32 %s20, 1
        %p300 = pneg %p53
        %p301 = pneg %p50
        %p302 = pneg %p74
        %p303 = pneg %p71
        %p304 = pneg %p95
        %p305 = pneg %p92
        %p306 = pneg %p116
        %p307 = pneg %p113
        %s308 = sadd.s32 %s29, %s30
        %p309 = scmp.lt.s32.totalorder %s308, 0
        %s310 = scalar_select %p309, %s308, 0
        %s311 = smul.u32 2, %s310
        %p312 = scmp.lt.s32.totalorder %s311, 1
        %s313 = scalar_select %p312, %s311, 1
        %s314 = smul.addr %s313, 8
        %s315 = scalar_lea.vmem %s4, %s314
        %p316 = pneg %p148
        %p317 = pneg %p145
        %s318 = sadd.s32 %s29, %s30
        %p319 = scmp.lt.s32.totalorder %s318, 0
        %s320 = scalar_select %p319, %s318, 0
        %s321 = smul.u32 2, %s320
        %p322 = scmp.lt.s32.totalorder %s321, 1
        %s323 = scalar_select %p322, %s321, 1
        %s324 = smul.addr %s323, 8
        %s325 = scalar_lea.vmem %s5, %s324
        %p326 = pneg %p180
        %p327 = pneg %p177
        %p328 = pneg %p206
        %p329 = pneg %p203
        %s330 = sand.u32 %s193, 1
        %s331 = scalar_lea.sflag [#allocation3], %s330
        %s332 = sand.u32 %s193, 1
        %s333 = smul.addr %s332, 8
        %s334 = scalar_lea.vmem [#allocation2], %s333
        %p335 = pneg %p232
        %p336 = pneg %p229
        %s337 = sand.u32 %s219, 1
        %s338 = scalar_lea.sflag [#allocation5], %s337
        %s339 = sand.u32 %s219, 1
        %s340 = smul.addr %s339, 8
        %s341 = scalar_lea.vmem [#allocation4], %s340
        %s342 = sadd.s32 %s29, %s30
        %p343 = scmp.lt.s32.totalorder %s342, 0
        %s344 = scalar_select %p343, %s342, 0
        %s345 = smul.u32 2, %s344
        %p346 = scmp.lt.s32.totalorder %s345, 1
        %s347 = scalar_select %p346, %s345, 1
        %s348 = smul.addr %s347, 8
        %s349 = scalar_lea.vmem %s4, %s348
        %s350 = sadd.s32 %s29, %s30
        %p351 = scmp.lt.s32.totalorder %s350, 0
        %s352 = scalar_select %p351, %s350, 0
        %s353 = smul.u32 2, %s352
        %s354 = sadd.s32 %s29, %s30
        %p355 = scmp.lt.s32.totalorder %s354, 0
        %s356 = scalar_select %p355, %s354, 0
        %s357 = smul.u32 2, %s356
        %p358 = scmp.lt.s32.totalorder %s357, 1
        %s359 = scalar_select %p358, %s357, 1
        %s360 = smul.addr %s359, 8
        %s361 = scalar_lea.vmem %s5, %s360
        %s362 = sadd.s32 %s29, %s30
        %p363 = scmp.lt.s32.totalorder %s362, 0
        %s364 = scalar_select %p363, %s362, 0
        %s365 = smul.u32 2, %s364
        %p366 = scmp.eq.s32.totalorder %s30, 0
        // Predicated region
        $region45: #{tpu_custom_call.1} parent=43 // pred_check
          %p367 = pneg %p366
        $region46: #{tpu_custom_call.1} parent=43 // pred_check_branch
          %369 = sbr.rel (%p367) target = $region48
        $region47: #{tpu_custom_call.1} parent=43 // pred_region
          %vm370 = vcmask 261120
          %371 = vst.msk [vmem:[%s334] sm:$0xff] %vm370, 0.0
          %372 = vst.msk [vmem:[%s341] sm:$0xff] %vm370, 0.0
        $region48: #{tpu_custom_call.1} parent=43 // pred_fallthru
          _
        %s373 = sadd.s32 %s29, %s30
        %s374 = smul.u32 %s373, 16
        %v375 = vlaneseq
        %v376 = vand.u32 %v375, 127
        %v377 = vstv %s374
        %v378 = vadd.s32 %v377, %v376
        %p379 = scmp.lt.s32.totalorder %s373, 1
        // Predicated region
        $region49: #{tpu_custom_call.1} parent=43 // pred_check
          %p380 = pneg %p379
        $region50: #{tpu_custom_call.1} parent=43 // pred_check_branch
          %382 = sbr.rel (%p380) target = $region52
        $region51: #{tpu_custom_call.1} parent=43 // pred_region
          %v383 = vld [vmem:[%s0] sm:$0xff]
          %384 = vset.pattern.permute.xlu0 0
          %385 = vperm.xlu0 %384, %v383
          %v386 = vpop.permute.xlu0 %385
          %vm387 = vcmp.ge.s32.totalorder %v378, %v386
          %v388 = vld [vmem:[%s1] sm:$0xff]
          %389 = vset.pattern.permute.xlu0 0
          %390 = vperm.xlu0 %389, %v388
          %v391 = vpop.permute.xlu0 %390
          %vm392 = vcmp.lt.s32.totalorder %v378, %v391
          %vm393 = vmand %vm387, %vm392
          %v394 = vsel %vm393, 1, 0
          %v395 = vcvt.s32.f32 %v394
          %v396 = vld [vmem:[%s334] sm:$0xff]
          %v397 = vld [vmem:[%s349] sm:$0xff]
          %v398 = vld [vmem:[%s349 + $0x8] sm:$0xff]
          %vm399 = vcmask 130048
          %v401 = vsel %vm399, %v395, 0
          %403 = vmatpush.msra.mxu0 0.0
          %404 = vmatpush.msra.mxu0 0.0
          %405 = vmatpush.msra.mxu0 0.0
          %406 = vmatpush.msra.mxu0 0.0
          %407 = vmatpush.msra.mxu0 0.0
          %408 = vmatpush.msra.mxu0 0.0
          %409 = vmatpush.msra.mxu0 0.0
          %410 = vmatpush.msra.mxu0 0.0
          %411 = vmatpush.msra.mxu0 0.0
          %412 = vmatpush.msra.mxu0 0.0
          %413 = vmatpush.msra.mxu0 0.0
          %414 = vmatpush.msra.mxu0 0.0
          %415 = vmatpush.msra.mxu0 0.0
          %416 = vmatpush.msra.mxu0 0.0
          %417 = vmatpush.msra.mxu0 %v398
          %418 = vmatpush.msra.mxu0 %v397
          %419 = vmatmul.f32.gmra.mxu0 %v401
          %v420 = vpop.f32.mrf.mxu0
          %v421 = vadd.f32 0.0, %v420
          %422 = vdwg.mxu0
          %v423 = vadd.f32 %v396, %v421
          %vm424 = vcmask 261120
          %425 = vst.msk [vmem:[%s334] sm:$0xff] %vm424, %v423
          %v426 = vld [vmem:[%s2] sm:$0xff]
          %427 = vset.pattern.permute.xlu0 0
          %428 = vperm.xlu0 %427, %v426
          %v429 = vpop.permute.xlu0 %428
          %vm430 = vcmp.ge.s32.totalorder %v378, %v429
          %v431 = vld [vmem:[%s3] sm:$0xff]
          %432 = vset.pattern.permute.xlu0 0
          %433 = vperm.xlu0 %432, %v431
          %v434 = vpop.permute.xlu0 %433
          %vm435 = vcmp.lt.s32.totalorder %v378, %v434
          %vm436 = vmand %vm430, %vm435
          %v437 = vsel %vm436, 1, 0
          %v438 = vcvt.s32.f32 %v437
          %v439 = vld [vmem:[%s341] sm:$0xff]
          %v440 = vld [vmem:[%s361] sm:$0xff]
          %v441 = vld [vmem:[%s361 + $0x8] sm:$0xff]
          %v443 = vsel %vm399, %v438, 0
          %445 = vmatpush.msra.mxu0 0.0
          %446 = vmatpush.msra.mxu0 0.0
          %447 = vmatpush.msra.mxu0 0.0
          %448 = vmatpush.msra.mxu0 0.0
          %449 = vmatpush.msra.mxu0 0.0
          %450 = vmatpush.msra.mxu0 0.0
          %451 = vmatpush.msra.mxu0 0.0
          %452 = vmatpush.msra.mxu0 0.0
          %453 = vmatpush.msra.mxu0 0.0
          %454 = vmatpush.msra.mxu0 0.0
          %455 = vmatpush.msra.mxu0 0.0
          %456 = vmatpush.msra.mxu0 0.0
          %457 = vmatpush.msra.mxu0 0.0
          %458 = vmatpush.msra.mxu0 0.0
          %459 = vmatpush.msra.mxu0 %v441
          %460 = vmatpush.msra.mxu0 %v440
          %461 = vmatmul.f32.gmra.mxu0 %v443
          %v462 = vpop.f32.mrf.mxu0
          %v463 = vadd.f32 0.0, %v462
          %464 = vdwg.mxu0
          %v465 = vadd.f32 %v439, %v463
          %466 = vst.msk [vmem:[%s341] sm:$0xff] %vm424, %v465
        $region52: #{tpu_custom_call.1} parent=43 // pred_fallthru
          _
        %s467 = sand.u32 %s193, 1
        %s468 = scalar_lea.sflag [#allocation3], %s467
        %s469 = sand.u32 %s193, 1
        %s470 = smul.addr %s469, 8
        %s471 = scalar_lea.vmem [#allocation2], %s470
        %s472 = sand.u32 %s219, 1
        %s473 = scalar_lea.sflag [#allocation5], %s472
        %s474 = sand.u32 %s219, 1
        %s475 = smul.addr %s474, 8
        %s476 = scalar_lea.vmem [#allocation4], %s475
        // Predicated region
        $region53: #{tpu_custom_call.1} parent=43 // pred_check
          %p477 = pneg %p203
        $region54: #{tpu_custom_call.1} parent=43 // pred_check_branch
          %479 = sbr.rel (%p477) target = $region56
        $region55: #{tpu_custom_call.1} parent=43 // pred_region
          %481 = vsyncadd %s468, 0
          %s482 = smul.addr %s29, 8
          %s483 = scalar_lea.hbm %s6, %s482
          %s485 = sshll.u32 %s471, 4
          %s486 = int_to_ptr.vmem [resolvable:$true] %s485
          %s487 = sshll.u32 %s483, 4
          %s488 = int_to_ptr.hbm [resolvable:$true] %s487
          %490 = dma.vmem_to_hbm [thread:$0]  %s486, 128, %s488, %s468
        $region56: #{tpu_custom_call.1} parent=43 // pred_fallthru
          _
        // Predicated region
        $region57: #{tpu_custom_call.1} parent=43 // pred_check
          %p491 = pneg %p229
        $region58: #{tpu_custom_call.1} parent=43 // pred_check_branch
          %493 = sbr.rel (%p491) target = $region60
        $region59: #{tpu_custom_call.1} parent=43 // pred_region
          %495 = vsyncadd %s473, 0
          %s496 = smul.addr %s29, 8
          %s497 = scalar_lea.hbm %s7, %s496
          %s499 = sshll.u32 %s476, 4
          %s500 = int_to_ptr.vmem [resolvable:$true] %s499
          %s501 = sshll.u32 %s497, 4
          %s502 = int_to_ptr.hbm [resolvable:$true] %s501
          %504 = dma.vmem_to_hbm [thread:$0]  %s500, 128, %s502, %s473
        $region60: #{tpu_custom_call.1} parent=43 // pred_fallthru
          _
      $region44: #{tpu_custom_call.1} parent=5 // pred_fallthru
        _
      %p505 = scmp.le.s32.totalorder 2, %s20
      // Predicated region
      $region61: #{tpu_custom_call.1} parent=5 // pred_check
        %p506 = pneg %p505
      $region62: #{tpu_custom_call.1} parent=5 // pred_check_branch
        %508 = sbr.rel (%p506) target = $region64
      $region63: #{tpu_custom_call.1} parent=5 // pred_region
        %s509 = ssub.s32 %s20, 2
        // Predicated region
        $region65: #{tpu_custom_call.1} parent=63 // pred_check
          %p510 = pneg %p209
        $region66: #{tpu_custom_call.1} parent=63 // pred_check_branch
          %512 = sbr.rel (%p510) target = $region68
        $region67: #{tpu_custom_call.1} parent=63 // pred_region
          %s513 = sand.u32 %s194, 1
          %s514 = scalar_lea.sflag [#allocation3], %s513
          %s515 = sand.u32 %s194, 1
          %s516 = smul.addr %s515, 8
          %s517 = scalar_lea.vmem [#allocation2], %s516
          %519 = dma.done %s514, 128
        $region68: #{tpu_custom_call.1} parent=63 // pred_fallthru
          _
        // Predicated region
        $region69: #{tpu_custom_call.1} parent=63 // pred_check
          %p520 = pneg %p235
        $region70: #{tpu_custom_call.1} parent=63 // pred_check_branch
          %522 = sbr.rel (%p520) target = $region72
        $region71: #{tpu_custom_call.1} parent=63 // pred_region
          %s523 = sand.u32 %s220, 1
          %s524 = scalar_lea.sflag [#allocation5], %s523
          %s525 = sand.u32 %s220, 1
          %s526 = smul.addr %s525, 8
          %s527 = scalar_lea.vmem [#allocation4], %s526
          %529 = dma.done %s524, 128
        $region72: #{tpu_custom_call.1} parent=63 // pred_fallthru
          _
      $region64: #{tpu_custom_call.1} parent=5 // pred_fallthru
        _
    $region6: #{tpu_custom_call.1} parent=1 // loop_footer
      %s24 = sadd.s32 1, %s20
    $region7: #{tpu_custom_call.1} parent=1 // loop_footer_branch
      %19 = sbr.rel target = $region3
    $region8: #{tpu_custom_call.1} parent=1 // loop_exit
      _
    %530 = vsyncpa [#allocation3], 1
    %s531 = scalar_lea.sflag [#allocation3], 1
    %532 = vsyncpa %s531, 1
    %533 = vsyncpa [#allocation5], 1
    %s534 = scalar_lea.sflag [#allocation5], 1
    %535 = vsyncpa %s534, 1

</llo_original>
